<compile_context>
chip_gen: v5e
topology: v5e:2x2
jax: 0.10.0
libtpu: 0.0.40
codegen_flags: <defaults>
</compile_context>

<pallas_src>
import functools

import jax
import jax.numpy as jnp
from jax.experimental import pallas as pl
from jax.experimental.pallas import tpu as pltpu


_LANES = 128
_SUBLANES = 8
_MAX_TILE_ROWS = 2048   # (2048,128) f32 = 1 MiB tile; x2 double-buffer + vreg acc << scoped VMEM


def _make_kernel(up: bool, tile_r: int, cpc: int, full_chunks: int, n_unlab: int):
    """CU-Loss partial-sum kernel with static hyper-params / sizes baked in."""

    def kernel(conf_ref, lab_ref, unlab_ref, out_ref, acc_ref):
        c = pl.program_id(0)            # TensorCore partition ("parallel")
        i = pl.program_id(1)            # chunk within this partition ("arbitrary")
        gchunk = c * cpc + i            # global (unclamped) chunk index

        @pl.when(i == 0)
        def _init():
            acc_ref[...] = jnp.zeros_like(acc_ref)

        # Single numerically-stable softplus pass; sign baked statically by `up`.
        x = unlab_ref[...].astype(jnp.float32)
        z = -x if up else x
        sp = jnp.maximum(z, 0.0) + jnp.log1p(jnp.exp(-jnp.abs(x)))

        # Chunks fully inside the data: no iota / compare / select, pure VALU
        # row-group add tree into a single (8,128) vreg accumulator.
        @pl.when(gchunk < full_chunks)
        def _full():
            acc_ref[...] += sp.reshape(tile_r // _SUBLANES, _SUBLANES, _LANES).sum(axis=0)

        # Boundary / duplicate chunks: mask the ragged tail (and any edge-block
        # garbage / duplicate-chunk data) before accumulating.
        @pl.when(gchunk >= full_chunks)
        def _ragged():
            row = jax.lax.broadcasted_iota(jnp.int32, (tile_r, _LANES), 0)
            lane = jax.lax.broadcasted_iota(jnp.int32, (tile_r, _LANES), 1)
            idx = gchunk * (tile_r * _LANES) + row * _LANES + lane
            m = jnp.where(idx < n_unlab, sp, 0.0)
            acc_ref[...] += m.reshape(tile_r // _SUBLANES, _SUBLANES, _LANES).sum(axis=0)

        last = i == pl.num_programs(1) - 1

        @pl.when(last)
        def _emit_unlab():
            out_ref[0, 0] = acc_ref[...]            # per-core unlabeled softplus partials

        # conf / labeled are tiny and VMEM-resident: reduce them once on core 0.
        @pl.when(last & (c == 0))
        def _emit_small():
            confv = conf_ref[...].astype(jnp.float32)
            labv = lab_ref[...].astype(jnp.float32)
            sp_lab = jnp.maximum(-labv, 0.0) + jnp.log1p(jnp.exp(-jnp.abs(labv)))
            r = jax.lax.broadcasted_iota(jnp.int32, (_SUBLANES, _LANES), 0)
            l = jax.lax.broadcasted_iota(jnp.int32, (_SUBLANES, _LANES), 1)
            pos00 = (r == 0) & (l == 0)
            zeros = jnp.zeros((_SUBLANES, _LANES), jnp.float32)
            out_ref[0, 1] = jnp.where(pos00, jnp.sum(confv), zeros)    # sum(conf)
            out_ref[0, 2] = jnp.where(pos00, jnp.sum(sp_lab), zeros)   # sum softplus(-labeled)
            out_ref[0, 3] = jnp.where(pos00, jnp.sum(labv), zeros)     # sum(labeled)

        @pl.when(last & (c != 0))
        def _emit_zero():
            zeros = jnp.zeros((_SUBLANES, _LANES), jnp.float32)
            out_ref[0, 1] = zeros
            out_ref[0, 2] = zeros
            out_ref[0, 3] = zeros

    return kernel


@functools.partial(jax.jit, static_argnames=("beta", "up", "non"))
def cu_loss_pallas(conf, labeled, unlabeled, *, beta: float, up: bool, non: bool = False):
    n_conf = int(conf.size)
    n_lab = int(labeled.size)
    n_unlab = int(unlabeled.size)
    assert n_conf > 0 and n_lab > 0 and n_unlab > 0, "CULoss needs non-empty inputs"

    # conf / labeled: small labeled set in 2IWIL -> pass untouched as
    # whole-array VMEM-resident blocks (no repack pass, no masks needed).
    conf2d = conf.reshape(n_conf, 1)
    lab2d = labeled.reshape(n_lab, 1)
    # TODO(synk): for very large labeled sets, stream conf/labeled too instead
    # of keeping them whole-array resident ((N,1) blocks pad lanes in VMEM).

    # unlabeled: the big streamed operand, viewed lane-dense (rows, 128).
    # Free reshape when n_unlab % 128 == 0; otherwise pad only to the next
    # lane boundary (single small copy, not a full tile-multiple repack).
    flat_u = unlabeled.reshape(-1)
    pad = (-n_unlab) % _LANES
    if pad:
        flat_u = jnp.pad(flat_u, (0, pad))
    rows = (n_unlab + pad) // _LANES
    unlab2d = flat_u.reshape(rows, _LANES)

    tile_r = max(_SUBLANES,
                 min(_MAX_TILE_ROWS, ((rows + _SUBLANES - 1) // _SUBLANES) * _SUBLANES))
    chunks = pl.cdiv(rows, tile_r)
    # v7x megacore: leading "parallel" axis splits chunks across the 2 cores;
    # runs sequentially (same work) on single-core v5e/v6e.
    num_cores = 2 if chunks >= 2 else 1
    cpc = pl.cdiv(chunks, num_cores)
    full_chunks = n_unlab // (tile_r * _LANES)      # chunks with no ragged tail
    last_block = chunks - 1
    assert num_cores * cpc * tile_r * _LANES < 2**31, "int32 flat-index overflow"

    kernel = _make_kernel(bool(up), tile_r, cpc, full_chunks, n_unlab)

    parts = pl.pallas_call(
        kernel,
        out_shape=jax.ShapeDtypeStruct((num_cores, 4, _SUBLANES, _LANES), jnp.float32),
        grid=(num_cores, cpc),
        in_specs=[
            pl.BlockSpec((n_conf, 1), lambda c, i: (0, 0)),
            pl.BlockSpec((n_lab, 1), lambda c, i: (0, 0)),
            # Clamp the block index so the (rare) duplicate chunk of the last
            # core re-reads a valid block; its contribution is fully masked.
            pl.BlockSpec((tile_r, _LANES),
                         lambda c, i: (jnp.minimum(c * cpc + i, last_block), 0)),
        ],
        out_specs=pl.BlockSpec((1, 4, _SUBLANES, _LANES), lambda c, i: (c, 0, 0, 0)),
        scratch_shapes=[pltpu.VMEM((_SUBLANES, _LANES), jnp.float32)],
        compiler_params=pltpu.CompilerParams(
            dimension_semantics=("parallel", "arbitrary")),
    )(conf2d, lab2d, unlab2d)

    # Tiny O(1) scalar combine (beta / up / non) from the raw partial sums.
    sums = jnp.sum(parts, axis=(0, 2, 3))           # (4,)
    s_sp_un, s_conf, s_sp_lab, s_lab = sums[0], sums[1], sums[2], sums[3]

    y_conf_pos = s_sp_lab / n_lab                    # mean softplus(-labeled)
    y_conf_neg = (s_sp_lab + s_lab) / n_lab          # mean softplus(+labeled)  (identity)
    mean_conf = s_conf / n_conf
    mean_sp_un = s_sp_un / n_unlab                   # mean softplus(-/+ unlabeled), sign per `up`

    if up:
        unlabeled_risk = beta * mean_sp_un
        neg_risk = (1.0 - mean_conf) * y_conf_neg
        pos_risk = (mean_conf - beta) * y_conf_pos + unlabeled_risk
    else:
        unlabeled_risk = beta * mean_sp_un
        pos_risk = mean_conf * y_conf_pos
        neg_risk = (1.0 - beta - mean_conf) * y_conf_neg + unlabeled_risk

    if non:
        return jnp.maximum(neg_risk, 0.0) + jnp.maximum(pos_risk, 0.0)
    return neg_risk + pos_risk


def cu_loss_reference(conf, labeled, unlabeled, *, beta, up, non=False):
    """Pure-JAX reference mirroring the PyTorch forward."""
    sp = jax.nn.softplus
    y_conf_pos = jnp.mean(sp(-labeled))
    y_conf_neg = jnp.mean(sp(labeled))
    if up:
        unlabeled_risk = jnp.mean(beta * jnp.mean(sp(-unlabeled)))
        neg_risk = jnp.mean((1.0 - conf) * y_conf_neg)
        pos_risk = jnp.mean((conf - beta) * y_conf_pos) + unlabeled_risk
    else:
        unlabeled_risk = jnp.mean(beta * jnp.mean(sp(unlabeled)))
        pos_risk = jnp.mean(conf * y_conf_pos)
        neg_risk = jnp.mean((1.0 - beta - conf) * y_conf_neg) + unlabeled_risk
    if non:
        return jnp.maximum(neg_risk, 0.0) + jnp.maximum(pos_risk, 0.0)
    return neg_risk + pos_risk


if __name__ == "__main__":
    key = jax.random.PRNGKey(0)
    k_conf, k_lab, k_unlab = jax.random.split(key, 3)

    n_labeled, n_unlabeled = 64, 128
    beta = 0.3
    non = False

    # conf in [0, 1]; labeled/unlabeled are classifier logits, (N, 1) columns as in 2IWIL.
    conf = jax.random.uniform(k_conf, (n_labeled, 1), dtype=jnp.float32)
    labeled = jax.random.normal(k_lab, (n_labeled, 1), dtype=jnp.float32)
    unlabeled = jax.random.normal(k_unlab, (n_unlabeled, 1), dtype=jnp.float32)

    # __init__ logic: UP decided from the confidence mean (static Python bool).
    up = bool(jnp.mean(conf) > 0.5)

    out = cu_loss_pallas(conf, labeled, unlabeled, beta=beta, up=up, non=non)
    out = jax.block_until_ready(out)

    ref = cu_loss_reference(conf, labeled, unlabeled, beta=beta, up=up, non=non)
    assert jnp.allclose(out, ref, rtol=1e-5, atol=1e-5), (out, ref)

    print("KERNEL_OK")
</pallas_src>

<mosaic_0001>
module attributes {stable_mosaic.version = 11 : i64} {
  func.func @kernel(%arg0: i32, %arg1: i32, %arg2: memref<64x1xf32, #tpu.memory_space<vmem>>, %arg3: memref<64x1xf32, #tpu.memory_space<vmem>>, %arg4: memref<8x128xf32, #tpu.memory_space<vmem>>, %arg5: memref<1x4x8x128xf32, #tpu.memory_space<vmem>>, %arg6: memref<8x128xf32, #tpu.memory_space<vmem>>) attributes {dimension_semantics = [#tpu.dimension_semantics<parallel>, #tpu.dimension_semantics<arbitrary>], iteration_bounds = array<i64: 1, 1>, scalar_prefetch = 0 : i64, scratch_operands = 1 : i64, tpu.core_type = #tpu.core_type<tc>, window_params = [{pipeline_mode = #tpu.pipeline_mode<synchronous>, transform_indices = @transform_0, window_bounds = array<i64: 64, 1>}, {pipeline_mode = #tpu.pipeline_mode<synchronous>, transform_indices = @transform_1, window_bounds = array<i64: 64, 1>}, {transform_indices = @transform_2, window_bounds = array<i64: 8, 128>}, {transform_indices = @transform_3, window_bounds = array<i64: 1, 4, 8, 128>}]} {
    %c1_i32 = arith.constant 1 : i32
    %0 = arith.muli %arg0, %c1_i32 : i32
    %1 = arith.addi %0, %arg1 : i32
    %c0_i32 = arith.constant 0 : i32
    %2 = arith.cmpi eq, %arg1, %c0_i32 : i32
    %3 = arith.extui %2 : i1 to i32
    %c0_i32_0 = arith.constant 0 : i32
    %4 = arith.cmpi ne, %3, %c0_i32_0 : i32
    scf.if %4 {
      %cst_14 = arith.constant 0.000000e+00 : f32
      %33 = vector.broadcast %cst_14 : f32 to vector<8x128xf32>
      %c0_15 = arith.constant 0 : index
      %c0_16 = arith.constant 0 : index
      %34 = vector.load %arg6[%c0_15, %c0_16] : memref<8x128xf32, #tpu.memory_space<vmem>>, vector<8x128xf32>
      tpu.vector_store %arg6[%c0_15, %c0_16], %33 {strides = array<i32>} : memref<8x128xf32, #tpu.memory_space<vmem>>, vector<8x128xf32>,
    } else {
    }
    %c0 = arith.constant 0 : index
    %c0_1 = arith.constant 0 : index
    %5 = vector.load %arg4[%c0, %c0_1] : memref<8x128xf32, #tpu.memory_space<vmem>>, vector<8x128xf32>
    %cst = arith.constant 0.000000e+00 : f32
    %6 = vector.broadcast %cst : f32 to vector<8x128xf32>
    %7 = arith.subf %6, %5 : vector<8x128xf32>
    %cst_2 = arith.constant 0.000000e+00 : f32
    %8 = vector.broadcast %cst_2 : f32 to vector<8x128xf32>
    %9 = arith.maximumf %7, %8 : vector<8x128xf32>
    %10 = math.absf %5 : vector<8x128xf32>
    %cst_3 = arith.constant 0.000000e+00 : f32
    %11 = vector.broadcast %cst_3 : f32 to vector<8x128xf32>
    %12 = arith.subf %11, %10 : vector<8x128xf32>
    %13 = math.exp %12 : vector<8x128xf32>
    %14 = math.log1p %13 : vector<8x128xf32>
    %15 = arith.addf %9, %14 : vector<8x128xf32>
    %c0_i32_4 = arith.constant 0 : i32
    %16 = arith.cmpi slt, %1, %c0_i32_4 : i32
    %17 = arith.extui %16 : i1 to i32
    %c0_i32_5 = arith.constant 0 : i32
    %18 = arith.cmpi ne, %17, %c0_i32_5 : i32
    scf.if %18 {
      %c0_14 = arith.constant 0 : index
      %c0_15 = arith.constant 0 : index
      %33 = vector.load %arg6[%c0_14, %c0_15] : memref<8x128xf32, #tpu.memory_space<vmem>>, vector<8x128xf32>
      %34 = vector.shape_cast %15 : vector<8x128xf32> to vector<1x8x128xf32>
      %cst_16 = arith.constant dense<0.000000e+00> : vector<8x128xf32>
      %35 = vector.multi_reduction <add>, %34, %cst_16 [0] : vector<1x8x128xf32> to vector<8x128xf32>
      %36 = arith.addf %33, %35 : vector<8x128xf32>
      %c0_17 = arith.constant 0 : index
      %c0_18 = arith.constant 0 : index
      %37 = vector.load %arg6[%c0_17, %c0_18] : memref<8x128xf32, #tpu.memory_space<vmem>>, vector<8x128xf32>
      tpu.vector_store %arg6[%c0_17, %c0_18], %36 {strides = array<i32>} : memref<8x128xf32, #tpu.memory_space<vmem>>, vector<8x128xf32>,
    } else {
    }
    %c0_i32_6 = arith.constant 0 : i32
    %19 = arith.cmpi sge, %1, %c0_i32_6 : i32
    %20 = arith.extui %19 : i1 to i32
    %c0_i32_7 = arith.constant 0 : i32
    %21 = arith.cmpi ne, %20, %c0_i32_7 : i32
    scf.if %21 {
      %33 = tpu.iota {dimensions = array<i32: 0>} : vector<8x128xi32>
      %34 = tpu.iota {dimensions = array<i32: 1>} : vector<8x128xi32>
      %c1024_i32 = arith.constant 1024 : i32
      %35 = arith.muli %1, %c1024_i32 : i32
      %c128_i32 = arith.constant 128 : i32
      %36 = vector.broadcast %c128_i32 : i32 to vector<8x128xi32>
      %37 = arith.muli %33, %36 : vector<8x128xi32>
      %38 = vector.broadcast %35 : i32 to vector<8x128xi32>
      %39 = arith.addi %38, %37 : vector<8x128xi32>
      %40 = arith.addi %39, %34 : vector<8x128xi32>
      %c128_i32_14 = arith.constant 128 : i32
      %41 = vector.broadcast %c128_i32_14 : i32 to vector<8x128xi32>
      %42 = arith.cmpi slt, %40, %41 : vector<8x128xi32>
      %cst_15 = arith.constant 0.000000e+00 : f32
      %43 = vector.broadcast %cst_15 : f32 to vector<8x128xf32>
      %44 = arith.select %42, %15, %43 : vector<8x128xi1>, vector<8x128xf32>
      %c0_16 = arith.constant 0 : index
      %c0_17 = arith.constant 0 : index
      %45 = vector.load %arg6[%c0_16, %c0_17] : memref<8x128xf32, #tpu.memory_space<vmem>>, vector<8x128xf32>
      %46 = vector.shape_cast %44 : vector<8x128xf32> to vector<1x8x128xf32>
      %cst_18 = arith.constant dense<0.000000e+00> : vector<8x128xf32>
      %47 = vector.multi_reduction <add>, %46, %cst_18 [0] : vector<1x8x128xf32> to vector<8x128xf32>
      %48 = arith.addf %45, %47 : vector<8x128xf32>
      %c0_19 = arith.constant 0 : index
      %c0_20 = arith.constant 0 : index
      %49 = vector.load %arg6[%c0_19, %c0_20] : memref<8x128xf32, #tpu.memory_space<vmem>>, vector<8x128xf32>
      tpu.vector_store %arg6[%c0_19, %c0_20], %48 {strides = array<i32>} : memref<8x128xf32, #tpu.memory_space<vmem>>, vector<8x128xf32>,
    } else {
    }
    %c0_i32_8 = arith.constant 0 : i32
    %22 = arith.cmpi eq, %arg1, %c0_i32_8 : i32
    %23 = arith.extui %22 : i1 to i32
    %c0_i32_9 = arith.constant 0 : i32
    %24 = arith.cmpi ne, %23, %c0_i32_9 : i32
    scf.if %24 {
      %c0_14 = arith.constant 0 : index
      %c0_15 = arith.constant 0 : index
      %33 = vector.load %arg6[%c0_14, %c0_15] : memref<8x128xf32, #tpu.memory_space<vmem>>, vector<8x128xf32>
      %c0_16 = arith.constant 0 : index
      %c0_17 = arith.constant 0 : index
      %c0_18 = arith.constant 0 : index
      %c0_19 = arith.constant 0 : index
      %34 = vector.load %arg5[%c0_16, %c0_17, %c0_18, %c0_19] : memref<1x4x8x128xf32, #tpu.memory_space<vmem>>, vector<1x1x8x128xf32>
      %35 = vector.shape_cast %34 : vector<1x1x8x128xf32> to vector<8x128xf32>
      %36 = vector.shape_cast %33 : vector<8x128xf32> to vector<1x1x8x128xf32>
      tpu.vector_store %arg5[%c0_16, %c0_17, %c0_18, %c0_19], %36 {strides = array<i32>} : memref<1x4x8x128xf32, #tpu.memory_space<vmem>>, vector<1x1x8x128xf32>,
    } else {
    }
    %c0_i32_10 = arith.constant 0 : i32
    %25 = arith.cmpi eq, %arg0, %c0_i32_10 : i32
    %26 = arith.andi %22, %25 : i1
    %27 = arith.extui %26 : i1 to i32
    %c0_i32_11 = arith.constant 0 : i32
    %28 = arith.cmpi ne, %27, %c0_i32_11 : i32
    scf.if %28 {
      %c0_14 = arith.constant 0 : index
      %c0_15 = arith.constant 0 : index
      %33 = vector.load %arg2[%c0_14, %c0_15] : memref<64x1xf32, #tpu.memory_space<vmem>>, vector<64x1xf32>
      %c0_16 = arith.constant 0 : index
      %c0_17 = arith.constant 0 : index
      %34 = vector.load %arg3[%c0_16, %c0_17] : memref<64x1xf32, #tpu.memory_space<vmem>>, vector<64x1xf32>
      %cst_18 = arith.constant 0.000000e+00 : f32
      %35 = vector.broadcast %cst_18 : f32 to vector<64x1xf32>
      %36 = arith.subf %35, %34 : vector<64x1xf32>
      %cst_19 = arith.constant 0.000000e+00 : f32
      %37 = vector.broadcast %cst_19 : f32 to vector<64x1xf32>
      %38 = arith.maximumf %36, %37 : vector<64x1xf32>
      %39 = math.absf %34 : vector<64x1xf32>
      %cst_20 = arith.constant 0.000000e+00 : f32
      %40 = vector.broadcast %cst_20 : f32 to vector<64x1xf32>
      %41 = arith.subf %40, %39 : vector<64x1xf32>
      %42 = math.exp %41 : vector<64x1xf32>
      %43 = math.log1p %42 : vector<64x1xf32>
      %44 = arith.addf %38, %43 : vector<64x1xf32>
      %45 = tpu.iota {dimensions = array<i32: 0>} : vector<8x128xi32>
      %46 = tpu.iota {dimensions = array<i32: 1>} : vector<8x128xi32>
      %c0_i32_21 = arith.constant 0 : i32
      %47 = vector.broadcast %c0_i32_21 : i32 to vector<8x128xi32>
      %48 = arith.cmpi eq, %45, %47 : vector<8x128xi32>
      %c0_i32_22 = arith.constant 0 : i32
      %49 = vector.broadcast %c0_i32_22 : i32 to vector<8x128xi32>
      %50 = arith.cmpi eq, %46, %49 : vector<8x128xi32>
      %51 = arith.andi %48, %50 : vector<8x128xi1>
      %cst_23 = arith.constant 0.000000e+00 : f32
      %52 = vector.broadcast %cst_23 : f32 to vector<8x128xf32>
      %53 = vector.shape_cast %33 : vector<64x1xf32> to vector<1x64x1xf32>
      %cst_24 = arith.constant dense<0.000000e+00> : vector<1xf32>
      %54 = vector.multi_reduction <add>, %53, %cst_24 [1, 2] : vector<1x64x1xf32> to vector<1xf32>
      %55 = vector.shape_cast %54 : vector<1xf32> to vector<1x1x1xf32>
      %56 = vector.extract %55[0, 0, 0] : f32 from vector<1x1x1xf32>
      %57 = vector.broadcast %56 : f32 to vector<8x128xf32>
      %58 = arith.select %51, %57, %52 : vector<8x128xi1>, vector<8x128xf32>
      %c0_25 = arith.constant 0 : index
      %c1 = arith.constant 1 : index
      %c0_26 = arith.constant 0 : index
      %c0_27 = arith.constant 0 : index
      %59 = vector.load %arg5[%c0_25, %c1, %c0_26, %c0_27] : memref<1x4x8x128xf32, #tpu.memory_space<vmem>>, vector<1x1x8x128xf32>
      %60 = vector.shape_cast %59 : vector<1x1x8x128xf32> to vector<8x128xf32>
      %61 = vector.shape_cast %58 : vector<8x128xf32> to vector<1x1x8x128xf32>
      tpu.vector_store %arg5[%c0_25, %c1, %c0_26, %c0_27], %61 {strides = array<i32>} : memref<1x4x8x128xf32, #tpu.memory_space<vmem>>, vector<1x1x8x128xf32>,
      %62 = vector.shape_cast %44 : vector<64x1xf32> to vector<1x64x1xf32>
      %cst_28 = arith.constant dense<0.000000e+00> : vector<1xf32>
      %63 = vector.multi_reduction <add>, %62, %cst_28 [1, 2] : vector<1x64x1xf32> to vector<1xf32>
      %64 = vector.shape_cast %63 : vector<1xf32> to vector<1x1x1xf32>
      %65 = vector.extract %64[0, 0, 0] : f32 from vector<1x1x1xf32>
      %66 = vector.broadcast %65 : f32 to vector<8x128xf32>
      %67 = arith.select %51, %66, %52 : vector<8x128xi1>, vector<8x128xf32>
      %c0_29 = arith.constant 0 : index
      %c2 = arith.constant 2 : index
      %c0_30 = arith.constant 0 : index
      %c0_31 = arith.constant 0 : index
      %68 = vector.load %arg5[%c0_29, %c2, %c0_30, %c0_31] : memref<1x4x8x128xf32, #tpu.memory_space<vmem>>, vector<1x1x8x128xf32>
      %69 = vector.shape_cast %68 : vector<1x1x8x128xf32> to vector<8x128xf32>
      %70 = vector.shape_cast %67 : vector<8x128xf32> to vector<1x1x8x128xf32>
      tpu.vector_store %arg5[%c0_29, %c2, %c0_30, %c0_31], %70 {strides = array<i32>} : memref<1x4x8x128xf32, #tpu.memory_space<vmem>>, vector<1x1x8x128xf32>,
      %71 = vector.shape_cast %34 : vector<64x1xf32> to vector<1x64x1xf32>
      %cst_32 = arith.constant dense<0.000000e+00> : vector<1xf32>
      %72 = vector.multi_reduction <add>, %71, %cst_32 [1, 2] : vector<1x64x1xf32> to vector<1xf32>
      %73 = vector.shape_cast %72 : vector<1xf32> to vector<1x1x1xf32>
      %74 = vector.extract %73[0, 0, 0] : f32 from vector<1x1x1xf32>
      %75 = vector.broadcast %74 : f32 to vector<8x128xf32>
      %76 = arith.select %51, %75, %52 : vector<8x128xi1>, vector<8x128xf32>
      %c0_33 = arith.constant 0 : index
      %c3 = arith.constant 3 : index
      %c0_34 = arith.constant 0 : index
      %c0_35 = arith.constant 0 : index
      %77 = vector.load %arg5[%c0_33, %c3, %c0_34, %c0_35] : memref<1x4x8x128xf32, #tpu.memory_space<vmem>>, vector<1x1x8x128xf32>
      %78 = vector.shape_cast %77 : vector<1x1x8x128xf32> to vector<8x128xf32>
      %79 = vector.shape_cast %76 : vector<8x128xf32> to vector<1x1x8x128xf32>
      tpu.vector_store %arg5[%c0_33, %c3, %c0_34, %c0_35], %79 {strides = array<i32>} : memref<1x4x8x128xf32, #tpu.memory_space<vmem>>, vector<1x1x8x128xf32>,
    } else {
    }
    %c0_i32_12 = arith.constant 0 : i32
    %29 = arith.cmpi ne, %arg0, %c0_i32_12 : i32
    %30 = arith.andi %22, %29 : i1
    %31 = arith.extui %30 : i1 to i32
    %c0_i32_13 = arith.constant 0 : i32
    %32 = arith.cmpi ne, %31, %c0_i32_13 : i32
    scf.if %32 {
      %cst_14 = arith.constant 0.000000e+00 : f32
      %33 = vector.broadcast %cst_14 : f32 to vector<8x128xf32>
      %c0_15 = arith.constant 0 : index
      %c1 = arith.constant 1 : index
      %c0_16 = arith.constant 0 : index
      %c0_17 = arith.constant 0 : index
      %34 = vector.load %arg5[%c0_15, %c1, %c0_16, %c0_17] : memref<1x4x8x128xf32, #tpu.memory_space<vmem>>, vector<1x1x8x128xf32>
      %35 = vector.shape_cast %34 : vector<1x1x8x128xf32> to vector<8x128xf32>
      %36 = vector.shape_cast %33 : vector<8x128xf32> to vector<1x1x8x128xf32>
      tpu.vector_store %arg5[%c0_15, %c1, %c0_16, %c0_17], %36 {strides = array<i32>} : memref<1x4x8x128xf32, #tpu.memory_space<vmem>>, vector<1x1x8x128xf32>,
      %c0_18 = arith.constant 0 : index
      %c2 = arith.constant 2 : index
      %c0_19 = arith.constant 0 : index
      %c0_20 = arith.constant 0 : index
      %37 = vector.load %arg5[%c0_18, %c2, %c0_19, %c0_20] : memref<1x4x8x128xf32, #tpu.memory_space<vmem>>, vector<1x1x8x128xf32>
      %38 = vector.shape_cast %37 : vector<1x1x8x128xf32> to vector<8x128xf32>
      %39 = vector.shape_cast %33 : vector<8x128xf32> to vector<1x1x8x128xf32>
      tpu.vector_store %arg5[%c0_18, %c2, %c0_19, %c0_20], %39 {strides = array<i32>} : memref<1x4x8x128xf32, #tpu.memory_space<vmem>>, vector<1x1x8x128xf32>,
      %c0_21 = arith.constant 0 : index
      %c3 = arith.constant 3 : index
      %c0_22 = arith.constant 0 : index
      %c0_23 = arith.constant 0 : index
      %40 = vector.load %arg5[%c0_21, %c3, %c0_22, %c0_23] : memref<1x4x8x128xf32, #tpu.memory_space<vmem>>, vector<1x1x8x128xf32>
      %41 = vector.shape_cast %40 : vector<1x1x8x128xf32> to vector<8x128xf32>
      %42 = vector.shape_cast %33 : vector<8x128xf32> to vector<1x1x8x128xf32>
      tpu.vector_store %arg5[%c0_21, %c3, %c0_22, %c0_23], %42 {strides = array<i32>} : memref<1x4x8x128xf32, #tpu.memory_space<vmem>>, vector<1x1x8x128xf32>,
    } else {
    }
    return
  }
  func.func @transform_0(%arg0: i32, %arg1: i32) -> (i32, i32) {
    %c0_i32 = arith.constant 0 : i32
    %c0_i32_0 = arith.constant 0 : i32
    %c0_i32_1 = arith.constant 0 : i32
    return %c0_i32, %c0_i32_0 : i32, i32
  }
  func.func @transform_1(%arg0: i32, %arg1: i32) -> (i32, i32) {
    %c0_i32 = arith.constant 0 : i32
    %c0_i32_0 = arith.constant 0 : i32
    %c0_i32_1 = arith.constant 0 : i32
    return %c0_i32, %c0_i32_0 : i32, i32
  }
  func.func @transform_2(%arg0: i32, %arg1: i32) -> (i32, i32) {
    %c1_i32 = arith.constant 1 : i32
    %0 = arith.muli %arg0, %c1_i32 : i32
    %1 = arith.addi %0, %arg1 : i32
    %c0_i32 = arith.constant 0 : i32
    %2 = arith.minsi %1, %c0_i32 : i32
    %c0_i32_0 = arith.constant 0 : i32
    %c0_i32_1 = arith.constant 0 : i32
    return %2, %c0_i32_0 : i32, i32
  }
  func.func @transform_3(%arg0: i32, %arg1: i32) -> (i32, i32, i32, i32) {
    %c0_i32 = arith.constant 0 : i32
    %c0_i32_0 = arith.constant 0 : i32
    %c0_i32_1 = arith.constant 0 : i32
    %c0_i32_2 = arith.constant 0 : i32
    return %arg0, %c0_i32, %c0_i32_0, %c0_i32_1 : i32, i32, i32, i32
  }
}

</mosaic_0001>

<llo_original>
// kernel: cu_loss_pallas.1
$region0: #{cu_loss_pallas.1}
  #allocation0 [shape = 'u32[]', space=smem, size = 0x4, offset = 0x4, fixed_abs, tag = 'smem constant byte address 0x4 - core index']
  #allocation1 [shape = 'u32[72,128]{1,0:T(1,128)}', space=vmem, size = 0x9000, scoped, tag = 'internal scratch']
  #allocation2 [shape = 'f32[8,128]{1,0:T(8,128)}', space=vmem, size = 0x1000, scoped, tag = 'scratch operand']
  %s0 = inlined_call_operand.vmem [shape: f32[64,1], index: 0, kind: input, shape index: {}]
  %s1 = inlined_call_operand.vmem [shape: f32[64,1], index: 1, kind: input, shape index: {}]
  %s2 = inlined_call_operand.vmem [shape: f32[1,128], index: 2, kind: input, shape index: {}]
  %s3 = inlined_call_operand.vmem [shape: f32[1,4,8,128], index: 3, kind: output, shape index: {}]
  %s4 = sld [smem:[#allocation0]]
  $region46: #{cu_loss_pallas.1} parent=0
    _
  %s6 = ssub.s32 1, %s4
  %s7 = scalar_select 0, %s6, %s4
  // Predicated region
  $region2: #{cu_loss_pallas.1} parent=0 // pred_check
    _
  $region3: #{cu_loss_pallas.1} parent=0 // pred_check_branch
    %9 = sbr.rel (0) target = $region5
  $region4: #{cu_loss_pallas.1} parent=0 // pred_region
    _
  $region5: #{cu_loss_pallas.1} parent=0 // pred_fallthru
    _
  // Predicated region
  $region6: #{cu_loss_pallas.1} parent=0 // pred_check
    _
  $region7: #{cu_loss_pallas.1} parent=0 // pred_check_branch
    %11 = sbr.rel (0) target = $region9
  $region8: #{cu_loss_pallas.1} parent=0 // pred_region
    _
  $region9: #{cu_loss_pallas.1} parent=0 // pred_fallthru
    _
  // Predicated region
  $region10: #{cu_loss_pallas.1} parent=0 // pred_check
    _
  $region11: #{cu_loss_pallas.1} parent=0 // pred_check_branch
    %13 = sbr.rel (0) target = $region13
  $region12: #{cu_loss_pallas.1} parent=0 // pred_region
    %s14 = sadd.s32 0, 0
    %p15 = scmp.lt.s32.totalorder %s14, 0
    %s16 = scalar_select %p15, %s14, 0
    %s17 = smul.u32 8, %s16
    %s18 = ssub.s32 1, %s17
    %p19 = scmp.lt.s32.totalorder %s17, 0
    %s20 = scalar_select %p19, %s17, 0
    %s21 = scalar_lea.vmem %s2, %s20
    %s22 = sadd.s32 0, 0
    %p23 = scmp.lt.s32.totalorder %s22, 0
    %s24 = scalar_select %p23, %s22, 0
    %s25 = smul.u32 8, %s24
    %s26 = ssub.s32 1, %s25
  $region13: #{cu_loss_pallas.1} parent=0 // pred_fallthru
    _
  %s27 = sadd.s32 0, 0
  %p28 = scmp.lt.s32.totalorder %s27, 0
  %s29 = scalar_select %p28, %s27, 0
  %s30 = smul.u32 8, %s29
  %s31 = ssub.s32 1, %s30
  %p32 = scmp.lt.s32.totalorder %s30, 0
  %s33 = scalar_select %p32, %s30, 0
  %s34 = scalar_lea.vmem %s2, %s33
  %s35 = sadd.s32 0, 0
  %p36 = scmp.lt.s32.totalorder %s35, 0
  %s37 = scalar_select %p36, %s35, 0
  %s38 = smul.u32 8, %s37
  %s39 = ssub.s32 1, %s38
  %p40 = scmp.lt.s32.totalorder %s38, 0
  %s41 = scalar_select %p40, %s38, 0
  %s42 = scalar_lea.vmem %s2, %s41
  %s43 = sadd.s32 0, 0
  %p44 = scmp.lt.s32.totalorder %s43, 0
  %s45 = scalar_select %p44, %s43, 0
  %s46 = smul.u32 8, %s45
  %s47 = ssub.s32 1, %s46
  %s48 = sadd.s32 0, 0
  %p49 = scmp.eq.s32.totalorder 0, 0
  // Predicated region
  $region14: #{cu_loss_pallas.1} parent=0 // pred_check
    %p50 = pneg %p49
  $region15: #{cu_loss_pallas.1} parent=0 // pred_check_branch
    %52 = sbr.rel (%p50) target = $region17
  $region16: #{cu_loss_pallas.1} parent=0 // pred_region
    %53 = vst [vmem:[#allocation2] sm:$0xff] 0.0
  $region17: #{cu_loss_pallas.1} parent=0 // pred_fallthru
    _
  %v54 = vld [vmem:[%s42] sm:$0xff]
  %v55 = vsub.f32 0.0, %v54
  %v56 = vmax.f32 %v55, 0.0
  %v57 = vand.u32 2147483647, %v54
  %v58 = vsub.f32 0.0, %v57
  %v59 = vmul.f32 %v58, 1.442695
  %v60 = vpow.pop %v59
  %v61 = vadd.f32 %v60, 1.0
  %v62 = vlog2.pop %v61
  %v63 = vmul.f32 %v62, 0.6931472
  %v64 = vmul.f32 -0.5, %v60
  %v65 = vadd.f32 %v64, 1.0
  %v66 = vmul.f32 %v65, %v60
  %v67 = vand.u32 2147483647, %v60
  %vm68 = vcmp.lt.f32.partialorder %v67, 0.0004427343
  %v69 = vsel %vm68, %v66, %v63
  %v70 = vadd.f32 %v56, %v69
  %p71 = scmp.lt.s32.totalorder %s48, 0
  // Predicated region
  $region18: #{cu_loss_pallas.1} parent=0 // pred_check
    %p72 = pneg %p71
  $region19: #{cu_loss_pallas.1} parent=0 // pred_check_branch
    %74 = sbr.rel (%p72) target = $region21
  $region20: #{cu_loss_pallas.1} parent=0 // pred_region
    %v75 = vld [vmem:[#allocation2] sm:$0xff]
    %v76 = vadd.f32 %v70, 0.0
    %v77 = vadd.f32 %v75, %v76
    %78 = vst [vmem:[#allocation2] sm:$0xff] %v77
  $region21: #{cu_loss_pallas.1} parent=0 // pred_fallthru
    _
  %p79 = scmp.ge.s32.totalorder %s48, 0
  // Predicated region
  $region22: #{cu_loss_pallas.1} parent=0 // pred_check
    %p80 = pneg %p79
  $region23: #{cu_loss_pallas.1} parent=0 // pred_check_branch
    %82 = sbr.rel (%p80) target = $region25
  $region24: #{cu_loss_pallas.1} parent=0 // pred_region
    %v83 = vlaneseq
    %v84 = vshrl.u32 %v83, 7
    %v85 = vlaneseq
    %v86 = vand.u32 %v85, 127
    %s87 = smul.u32 %s48, 1024
    %v88 = vmul.u32 %v84, 128
    %v89 = vstv %s87
    %v90 = vadd.s32 %v89, %v88
    %v91 = vadd.s32 %v90, %v86
    %vm92 = vcmp.lt.s32.totalorder %v91, 128
    %v93 = vsel %vm92, %v70, 0.0
    %v94 = vld [vmem:[#allocation2] sm:$0xff]
    %v95 = vadd.f32 %v93, 0.0
    %v96 = vadd.f32 %v94, %v95
    %97 = vst [vmem:[#allocation2] sm:$0xff] %v96
  $region25: #{cu_loss_pallas.1} parent=0 // pred_fallthru
    _
  // Predicated region
  $region26: #{cu_loss_pallas.1} parent=0 // pred_check
    %p98 = pneg %p49
  $region27: #{cu_loss_pallas.1} parent=0 // pred_check_branch
    %100 = sbr.rel (%p98) target = $region29
  $region28: #{cu_loss_pallas.1} parent=0 // pred_region
    %v101 = vld [vmem:[#allocation2] sm:$0xff]
    %102 = vst [vmem:[%s3] sm:$0xff] %v101
  $region29: #{cu_loss_pallas.1} parent=0 // pred_fallthru
    _
  %p103 = scmp.eq.s32.totalorder 0, 0
  %p104 = pnand %p49, %p103
  %p105 = pneg %p104
  // Predicated region
  $region30: #{cu_loss_pallas.1} parent=0 // pred_check
    _
  $region31: #{cu_loss_pallas.1} parent=0 // pred_check_branch
    %107 = sbr.rel (%p104) target = $region33
  $region32: #{cu_loss_pallas.1} parent=0 // pred_region
    %v108 = vld [vmem:[%s0] sm:$0xff]
    %v109 = vld [vmem:[%s0 + $0x8] sm:$0xff]
    %v110 = vld [vmem:[%s0 + $0x10] sm:$0xff]
    %v111 = vld [vmem:[%s0 + $0x18] sm:$0xff]
    %v112 = vld [vmem:[%s0 + $0x20] sm:$0xff]
    %v113 = vld [vmem:[%s0 + $0x28] sm:$0xff]
    %v114 = vld [vmem:[%s0 + $0x30] sm:$0xff]
    %v115 = vld [vmem:[%s0 + $0x38] sm:$0xff]
    %v116 = vld [vmem:[%s1] sm:$0xff]
    %v117 = vld [vmem:[%s1 + $0x8] sm:$0xff]
    %v118 = vld [vmem:[%s1 + $0x10] sm:$0xff]
    %v119 = vld [vmem:[%s1 + $0x18] sm:$0xff]
    %v120 = vld [vmem:[%s1 + $0x20] sm:$0xff]
    %v121 = vld [vmem:[%s1 + $0x28] sm:$0xff]
    %v122 = vld [vmem:[%s1 + $0x30] sm:$0xff]
    %v123 = vld [vmem:[%s1 + $0x38] sm:$0xff]
    %v124 = vsub.f32 0.0, %v116
    %v125 = vsub.f32 0.0, %v117
    %v126 = vsub.f32 0.0, %v118
    %v127 = vsub.f32 0.0, %v119
    %v128 = vsub.f32 0.0, %v120
    %v129 = vsub.f32 0.0, %v121
    %v130 = vsub.f32 0.0, %v122
    %v131 = vsub.f32 0.0, %v123
    %v132 = vmax.f32 %v124, 0.0
    %v133 = vmax.f32 %v125, 0.0
    %v134 = vmax.f32 %v126, 0.0
    %v135 = vmax.f32 %v127, 0.0
    %v136 = vmax.f32 %v128, 0.0
    %v137 = vmax.f32 %v129, 0.0
    %v138 = vmax.f32 %v130, 0.0
    %v139 = vmax.f32 %v131, 0.0
    %v140 = vand.u32 2147483647, %v116
    %v141 = vand.u32 2147483647, %v117
    %v142 = vand.u32 2147483647, %v118
    %v143 = vand.u32 2147483647, %v119
    %v144 = vand.u32 2147483647, %v120
    %v145 = vand.u32 2147483647, %v121
    %v146 = vand.u32 2147483647, %v122
    %v147 = vand.u32 2147483647, %v123
    %v148 = vsub.f32 0.0, %v140
    %v149 = vsub.f32 0.0, %v141
    %v150 = vsub.f32 0.0, %v142
    %v151 = vsub.f32 0.0, %v143
    %v152 = vsub.f32 0.0, %v144
    %v153 = vsub.f32 0.0, %v145
    %v154 = vsub.f32 0.0, %v146
    %v155 = vsub.f32 0.0, %v147
    %v156 = vmul.f32 %v148, 1.442695
    %v157 = vpow.pop %v156
    %v158 = vmul.f32 %v149, 1.442695
    %v159 = vpow.pop %v158
    %v160 = vmul.f32 %v150, 1.442695
    %v161 = vpow.pop %v160
    %v162 = vmul.f32 %v151, 1.442695
    %v163 = vpow.pop %v162
    %v164 = vmul.f32 %v152, 1.442695
    %v165 = vpow.pop %v164
    %v166 = vmul.f32 %v153, 1.442695
    %v167 = vpow.pop %v166
    %v168 = vmul.f32 %v154, 1.442695
    %v169 = vpow.pop %v168
    %v170 = vmul.f32 %v155, 1.442695
    %v171 = vpow.pop %v170
    %v172 = vadd.f32 %v157, 1.0
    %v173 = vlog2.pop %v172
    %v174 = vmul.f32 %v173, 0.6931472
    %v175 = vmul.f32 -0.5, %v157
    %v176 = vadd.f32 %v175, 1.0
    %v177 = vmul.f32 %v176, %v157
    %v178 = vand.u32 2147483647, %v157
    %vm179 = vcmp.lt.f32.partialorder %v178, 0.0004427343
    %v180 = vsel %vm179, %v177, %v174
    %v181 = vadd.f32 %v159, 1.0
    %v182 = vlog2.pop %v181
    %v183 = vmul.f32 %v182, 0.6931472
    %v184 = vmul.f32 -0.5, %v159
    %v185 = vadd.f32 %v184, 1.0
    %v186 = vmul.f32 %v185, %v159
    %v187 = vand.u32 2147483647, %v159
    %vm188 = vcmp.lt.f32.partialorder %v187, 0.0004427343
    %v189 = vsel %vm188, %v186, %v183
    %v190 = vadd.f32 %v161, 1.0
    %v191 = vlog2.pop %v190
    %v192 = vmul.f32 %v191, 0.6931472
    %v193 = vmul.f32 -0.5, %v161
    %v194 = vadd.f32 %v193, 1.0
    %v195 = vmul.f32 %v194, %v161
    %v196 = vand.u32 2147483647, %v161
    %vm197 = vcmp.lt.f32.partialorder %v196, 0.0004427343
    %v198 = vsel %vm197, %v195, %v192
    %v199 = vadd.f32 %v163, 1.0
    %v200 = vlog2.pop %v199
    %v201 = vmul.f32 %v200, 0.6931472
    %v202 = vmul.f32 -0.5, %v163
    %v203 = vadd.f32 %v202, 1.0
    %v204 = vmul.f32 %v203, %v163
    %v205 = vand.u32 2147483647, %v163
    %vm206 = vcmp.lt.f32.partialorder %v205, 0.0004427343
    %v207 = vsel %vm206, %v204, %v201
    %v208 = vadd.f32 %v165, 1.0
    %v209 = vlog2.pop %v208
    %v210 = vmul.f32 %v209, 0.6931472
    %v211 = vmul.f32 -0.5, %v165
    %v212 = vadd.f32 %v211, 1.0
    %v213 = vmul.f32 %v212, %v165
    %v214 = vand.u32 2147483647, %v165
    %vm215 = vcmp.lt.f32.partialorder %v214, 0.0004427343
    %v216 = vsel %vm215, %v213, %v210
    %v217 = vadd.f32 %v167, 1.0
    %v218 = vlog2.pop %v217
    %v219 = vmul.f32 %v218, 0.6931472
    %v220 = vmul.f32 -0.5, %v167
    %v221 = vadd.f32 %v220, 1.0
    %v222 = vmul.f32 %v221, %v167
    %v223 = vand.u32 2147483647, %v167
    %vm224 = vcmp.lt.f32.partialorder %v223, 0.0004427343
    %v225 = vsel %vm224, %v222, %v219
    %v226 = vadd.f32 %v169, 1.0
    %v227 = vlog2.pop %v226
    %v228 = vmul.f32 %v227, 0.6931472
    %v229 = vmul.f32 -0.5, %v169
    %v230 = vadd.f32 %v229, 1.0
    %v231 = vmul.f32 %v230, %v169
    %v232 = vand.u32 2147483647, %v169
    %vm233 = vcmp.lt.f32.partialorder %v232, 0.0004427343
    %v234 = vsel %vm233, %v231, %v228
    %v235 = vadd.f32 %v171, 1.0
    %v236 = vlog2.pop %v235
    %v237 = vmul.f32 %v236, 0.6931472
    %v238 = vmul.f32 -0.5, %v171
    %v239 = vadd.f32 %v238, 1.0
    %v240 = vmul.f32 %v239, %v171
    %v241 = vand.u32 2147483647, %v171
    %vm242 = vcmp.lt.f32.partialorder %v241, 0.0004427343
    %v243 = vsel %vm242, %v240, %v237
    %v244 = vadd.f32 %v132, %v180
    %v245 = vadd.f32 %v133, %v189
    %v246 = vadd.f32 %v134, %v198
    %v247 = vadd.f32 %v135, %v207
    %v248 = vadd.f32 %v136, %v216
    %v249 = vadd.f32 %v137, %v225
    %v250 = vadd.f32 %v138, %v234
    %v251 = vadd.f32 %v139, %v243
    %v252 = vlaneseq
    %v253 = vshrl.u32 %v252, 7
    %v254 = vlaneseq
    %v255 = vand.u32 %v254, 127
    %vm256 = vcmp.eq.s32.totalorder %v253, 0
    %vm257 = vcmp.eq.s32.totalorder %v255, 0
    %vm258 = vmand %vm256, %vm257
    %vm259 = vcmask 7168
    %v260 = vsel %vm259, %v108, 0.0
    %v261 = vsel %vm259, %v109, 0.0
    %v262 = vadd.f32 %v260, %v261
    %v263 = vsel %vm259, %v110, 0.0
    %v264 = vadd.f32 %v262, %v263
    %v265 = vsel %vm259, %v111, 0.0
    %v266 = vadd.f32 %v264, %v265
    %v267 = vsel %vm259, %v112, 0.0
    %v268 = vadd.f32 %v266, %v267
    %v269 = vsel %vm259, %v113, 0.0
    %v270 = vadd.f32 %v268, %v269
    %v271 = vsel %vm259, %v114, 0.0
    %v272 = vadd.f32 %v270, %v271
    %v273 = vsel %vm259, %v115, 0.0
    %v274 = vadd.f32 %v272, %v273
    %275 = vadd.xlane.f32.xlu0 %v274
    %v276 = vpop.xlane.xlu0 %275
    %v277 = vrot.slane %v276, 4
    %v278 = vadd.f32 %v276, %v277
    %v279 = vrot.slane %v278, 2
    %v280 = vadd.f32 %v278, %v279
    %v281 = vrot.slane %v280, 1
    %v282 = vadd.f32 %v280, %v281
    %s283 = vtos %v282
    %v284 = vstv %s283
    %v285 = vsel %vm258, %v284, 0.0
    %s286 = scalar_lea.vmem %s3, 8
    %287 = vst [vmem:[%s286] sm:$0xff] %v285
    %v288 = vsel %vm259, %v244, 0.0
    %v289 = vsel %vm259, %v245, 0.0
    %v290 = vadd.f32 %v288, %v289
    %v291 = vsel %vm259, %v246, 0.0
    %v292 = vadd.f32 %v290, %v291
    %v293 = vsel %vm259, %v247, 0.0
    %v294 = vadd.f32 %v292, %v293
    %v295 = vsel %vm259, %v248, 0.0
    %v296 = vadd.f32 %v294, %v295
    %v297 = vsel %vm259, %v249, 0.0
    %v298 = vadd.f32 %v296, %v297
    %v299 = vsel %vm259, %v250, 0.0
    %v300 = vadd.f32 %v298, %v299
    %v301 = vsel %vm259, %v251, 0.0
    %v302 = vadd.f32 %v300, %v301
    %303 = vadd.xlane.f32.xlu0 %v302
    %v304 = vpop.xlane.xlu0 %303
    %v305 = vrot.slane %v304, 4
    %v306 = vadd.f32 %v304, %v305
    %v307 = vrot.slane %v306, 2
    %v308 = vadd.f32 %v306, %v307
    %v309 = vrot.slane %v308, 1
    %v310 = vadd.f32 %v308, %v309
    %s311 = vtos %v310
    %v312 = vstv %s311
    %v313 = vsel %vm258, %v312, 0.0
    %s314 = scalar_lea.vmem %s3, 16
    %315 = vst [vmem:[%s314] sm:$0xff] %v313
    %v316 = vsel %vm259, %v116, 0.0
    %v317 = vsel %vm259, %v117, 0.0
    %v318 = vadd.f32 %v316, %v317
    %v319 = vsel %vm259, %v118, 0.0
    %v320 = vadd.f32 %v318, %v319
    %v321 = vsel %vm259, %v119, 0.0
    %v322 = vadd.f32 %v320, %v321
    %v323 = vsel %vm259, %v120, 0.0
    %v324 = vadd.f32 %v322, %v323
    %v325 = vsel %vm259, %v121, 0.0
    %v326 = vadd.f32 %v324, %v325
    %v327 = vsel %vm259, %v122, 0.0
    %v328 = vadd.f32 %v326, %v327
    %v329 = vsel %vm259, %v123, 0.0
    %v330 = vadd.f32 %v328, %v329
    %331 = vadd.xlane.f32.xlu0 %v330
    %v332 = vpop.xlane.xlu0 %331
    %v333 = vrot.slane %v332, 4
    %v334 = vadd.f32 %v332, %v333
    %v335 = vrot.slane %v334, 2
    %v336 = vadd.f32 %v334, %v335
    %v337 = vrot.slane %v336, 1
    %v338 = vadd.f32 %v336, %v337
    %s339 = vtos %v338
    %v340 = vstv %s339
    %v341 = vsel %vm258, %v340, 0.0
    %s342 = scalar_lea.vmem %s3, 24
    %343 = vst [vmem:[%s342] sm:$0xff] %v341
  $region33: #{cu_loss_pallas.1} parent=0 // pred_fallthru
    _
  %p344 = scmp.ne.s32.totalorder 0, 0
  %p345 = pnand %p49, %p344
  %p346 = pneg %p345
  // Predicated region
  $region34: #{cu_loss_pallas.1} parent=0 // pred_check
    _
  $region35: #{cu_loss_pallas.1} parent=0 // pred_check_branch
    %348 = sbr.rel (%p345) target = $region37
  $region36: #{cu_loss_pallas.1} parent=0 // pred_region
    %s349 = scalar_lea.vmem %s3, 8
    %350 = vst [vmem:[%s349] sm:$0xff] 0.0
    %s351 = scalar_lea.vmem %s3, 16
    %352 = vst [vmem:[%s351] sm:$0xff] 0.0
    %s353 = scalar_lea.vmem %s3, 24
    %354 = vst [vmem:[%s353] sm:$0xff] 0.0
  $region37: #{cu_loss_pallas.1} parent=0 // pred_fallthru
    _
  // Predicated region
  $region38: #{cu_loss_pallas.1} parent=0 // pred_check
    _
  $region39: #{cu_loss_pallas.1} parent=0 // pred_check_branch
    %356 = sbr.rel (0) target = $region41
  $region40: #{cu_loss_pallas.1} parent=0 // pred_region
    _
  $region41: #{cu_loss_pallas.1} parent=0 // pred_fallthru
    _
  // Predicated region
  $region42: #{cu_loss_pallas.1} parent=0 // pred_check
    _
  $region43: #{cu_loss_pallas.1} parent=0 // pred_check_branch
    %358 = sbr.rel (0) target = $region45
  $region44: #{cu_loss_pallas.1} parent=0 // pred_region
    _
  $region45: #{cu_loss_pallas.1} parent=0 // pred_fallthru
    _

</llo_original>
